<compile_context>
chip_gen: v7x
topology: tpu7x:2x2x1
jax: 0.10.0
libtpu: 0.0.40
codegen_flags: <defaults>
</compile_context>

<pallas_src>
import jax
import jax.numpy as jnp
from jax import lax
from jax.experimental import pallas as pl
from jax.experimental.pallas import tpu as pltpu


def critic_kernel(x_ref,
                  w1_ref, b1_ref,
                  w2_ref, b2_ref,
                  w3_ref, b3_ref,
                  w4_ref, b4_ref,
                  w5_ref, b5_ref,
                  out_ref):
    """Fused 5-layer MLP forward on a (TM, F) batch tile -> (1, TM) values."""
    x = x_ref[...].astype(jnp.bfloat16)                               # (TM, F)

    # Layer 1: contract feature axes of W1 (H, F) and x (TM, F) -> (H, TM);
    # batch lands on the lane axis with no explicit transpose.
    h = lax.dot_general(w1_ref[...], x,
                        dimension_numbers=(((1,), (1,)), ((), ())),
                        preferred_element_type=jnp.float32)
    h = jnp.maximum(h + b1_ref[...], 0.0)

    h = jnp.dot(w2_ref[...], h.astype(jnp.bfloat16),
                preferred_element_type=jnp.float32)
    h = jnp.maximum(h + b2_ref[...], 0.0)

    h = jnp.dot(w3_ref[...], h.astype(jnp.bfloat16),
                preferred_element_type=jnp.float32)
    h = jnp.maximum(h + b3_ref[...], 0.0)

    h = jnp.dot(w4_ref[...], h.astype(jnp.bfloat16),
                preferred_element_type=jnp.float32)
    h = jnp.maximum(h + b4_ref[...], 0.0)

    # Final single-output layer: VPU broadcast-mul + sublane (XLU) reduction in
    # f32 instead of an N=1 MXU matmul.
    v = jnp.sum(h * w5_ref[...], axis=0, keepdims=True) + b5_ref[...]  # (1, TM)
    out_ref[...] = v.astype(out_ref.dtype)


def _round_up(n, m):
    return ((n + m - 1) // m) * m


def _default_batch_tile(batch):
    if batch <= 128:
        return batch                                   # single exact tile, no masking
    # Big tiles amortize the ~0.35us per-grid-step overhead, but keep >= 2 steps
    # when possible so the "parallel" batch axis shards across v7x's two TCs.
    half = _round_up((batch + 1) // 2, 256)
    return max(128, min(1024, half, _round_up(batch, 128)))


def critic_forward(x, params, tm=None):
    """x: (B, state_dim + action_dim) float32 -> (B, 1) float32."""
    B, F = x.shape
    if tm is None:
        tm = _default_batch_tile(B)
    grid = (pl.cdiv(B, tm),)
    n_steps = grid[0]

    (w1, b1), (w2, b2), (w3, b3), (w4, b4), (w5, b5) = params
    # bf16 weights feed the MXU at native rate (and halve weight DMA/VMEM);
    # biases and the 1-wide final layer stay f32 (pure VPU/XLU work).
    w1, w2, w3, w4 = (w.astype(jnp.bfloat16) for w in (w1, w2, w3, w4))
    flat = [w1, b1, w2, b2, w3, b3, w4, b4, w5, b5]

    x_bufs = 3 if n_steps > 1 else None   # deeper pipeline hides x-tile DMA latency
    w_bufs = 1 if n_steps > 1 else None   # resident weights: no double buffer

    def build(use_buffering):
        def spec(shape, index_map, bufs):
            if use_buffering and bufs is not None and hasattr(pl, "Buffered"):
                return pl.BlockSpec(shape, index_map,
                                    pipeline_mode=pl.Buffered(bufs))
            return pl.BlockSpec(shape, index_map)

        def const_spec(a):
            # Full-array block, constant index_map: DMA'd once, stays resident.
            return spec(a.shape, lambda i: (0, 0), w_bufs)

        in_specs = ([spec((tm, F), lambda i: (i, 0), x_bufs)]
                    + [const_spec(a) for a in flat])
        return pl.pallas_call(
            critic_kernel,
            out_shape=jax.ShapeDtypeStruct((1, B), jnp.float32),
            grid=grid,
            in_specs=in_specs,
            out_specs=pl.BlockSpec((1, tm), lambda i: (0, i)),
            compiler_params=pltpu.CompilerParams(
                dimension_semantics=("parallel",),
                vmem_limit_bytes=48 * 1024 * 1024),   # stays under v7x's 64 MiB
        )

    try:
        out = build(True)(x, *flat)
    except Exception:
        # Fallback for JAX builds where BlockSpec.pipeline_mode / pl.Buffered is
        # rejected at construction or lowering time; semantics are identical.
        out = build(False)(x, *flat)

    return out.T                                                      # (B, 1)


def init_critic_params(key, state_dim, action_dim, hidden_dim):
    """PyTorch nn.Linear-style init.

    Layers 1-4: weight (out, in) [torch layout], bias (out, 1).
    Layer 5:    weight stored transposed as (hidden, 1), bias (1, 1) so the
                kernel's broadcast-multiply + reduce path applies directly.
    """
    dims = [state_dim + action_dim, hidden_dim, hidden_dim, hidden_dim, hidden_dim, 1]
    params = []
    for i in range(len(dims) - 1):
        fan_in, fan_out = dims[i], dims[i + 1]
        key, kw, kb = jax.random.split(key, 3)
        bound = 1.0 / (fan_in ** 0.5)
        w = jax.random.uniform(kw, (fan_out, fan_in), jnp.float32, -bound, bound)
        b = jax.random.uniform(kb, (fan_out, 1), jnp.float32, -bound, bound)
        params.append((w, b))
    w5, b5 = params[-1]
    params[-1] = (w5.T, b5)      # (hidden, 1), (1, 1)
    return params


def critic_reference(x, params):
    """Pure-JAX f32 reference for correctness check (batch-major layout)."""
    h = x
    for (w, b) in params[:-1]:
        h = jnp.maximum(h @ w.T + b.T, 0.0)
    w5, b5 = params[-1]          # (hidden, 1), (1, 1)
    return h @ w5 + b5


if __name__ == "__main__":
    state_dim, action_dim, hidden_dim = 12, 4, 32
    batch = 8

    key = jax.random.PRNGKey(0)
    key, kx = jax.random.split(key)
    x = jax.random.normal(kx, (batch, state_dim + action_dim), jnp.float32)

    params = init_critic_params(key, state_dim, action_dim, hidden_dim)

    out = jax.block_until_ready(critic_forward(x, params))
    ref = critic_reference(x, params)

    assert out.shape == (batch, 1), out.shape
    # bf16 MXU operands -> looser tolerance than a pure-f32 pipeline.
    assert jnp.allclose(out, ref, atol=3e-2, rtol=3e-2), (out, ref)

    print("KERNEL_OK")
</pallas_src>

<mosaic_0001>
module attributes {stable_mosaic.version = 11 : i64} {
  func.func @critic_kernel(%arg0: i32, %arg1: memref<8x16xf32, #tpu.memory_space<vmem>>, %arg2: memref<32x16xbf16, #tpu.memory_space<vmem>>, %arg3: memref<32x1xf32, #tpu.memory_space<vmem>>, %arg4: memref<32x32xbf16, #tpu.memory_space<vmem>>, %arg5: memref<32x1xf32, #tpu.memory_space<vmem>>, %arg6: memref<32x32xbf16, #tpu.memory_space<vmem>>, %arg7: memref<32x1xf32, #tpu.memory_space<vmem>>, %arg8: memref<32x32xbf16, #tpu.memory_space<vmem>>, %arg9: memref<32x1xf32, #tpu.memory_space<vmem>>, %arg10: memref<32x1xf32, #tpu.memory_space<vmem>>, %arg11: memref<1x1xf32, #tpu.memory_space<vmem>>, %arg12: memref<1x8xf32, #tpu.memory_space<vmem>>) attributes {dimension_semantics = [#tpu.dimension_semantics<parallel>], iteration_bounds = array<i64: 1>, scalar_prefetch = 0 : i64, scratch_operands = 0 : i64, tpu.core_type = #tpu.core_type<tc>, window_params = [{transform_indices = @transform_0, window_bounds = array<i64: 8, 16>}, {pipeline_mode = #tpu.pipeline_mode<synchronous>, transform_indices = @transform_1, window_bounds = array<i64: 32, 16>}, {pipeline_mode = #tpu.pipeline_mode<synchronous>, transform_indices = @transform_2, window_bounds = array<i64: 32, 1>}, {pipeline_mode = #tpu.pipeline_mode<synchronous>, transform_indices = @transform_3, window_bounds = array<i64: 32, 32>}, {pipeline_mode = #tpu.pipeline_mode<synchronous>, transform_indices = @transform_4, window_bounds = array<i64: 32, 1>}, {pipeline_mode = #tpu.pipeline_mode<synchronous>, transform_indices = @transform_5, window_bounds = array<i64: 32, 32>}, {pipeline_mode = #tpu.pipeline_mode<synchronous>, transform_indices = @transform_6, window_bounds = array<i64: 32, 1>}, {pipeline_mode = #tpu.pipeline_mode<synchronous>, transform_indices = @transform_7, window_bounds = array<i64: 32, 32>}, {pipeline_mode = #tpu.pipeline_mode<synchronous>, transform_indices = @transform_8, window_bounds = array<i64: 32, 1>}, {pipeline_mode = #tpu.pipeline_mode<synchronous>, transform_indices = @transform_9, window_bounds = array<i64: 32, 1>}, {pipeline_mode = #tpu.pipeline_mode<synchronous>, transform_indices = @transform_10, window_bounds = array<i64: 1, 1>}, {transform_indices = @transform_11, window_bounds = array<i64: 1, 8>}]} {
    %c0 = arith.constant 0 : index
    %c0_0 = arith.constant 0 : index
    %0 = vector.load %arg1[%c0, %c0_0] : memref<8x16xf32, #tpu.memory_space<vmem>>, vector<8x16xf32>
    %1 = arith.truncf %0 : vector<8x16xf32> to vector<8x16xbf16>
    %c0_1 = arith.constant 0 : index
    %c0_2 = arith.constant 0 : index
    %2 = vector.load %arg2[%c0_1, %c0_2] : memref<32x16xbf16, #tpu.memory_space<vmem>>, vector<32x16xbf16>
    %cst = arith.constant dense<0.000000e+00> : vector<32x8xf32>
    %3 = tpu.matmul %2, %1, %cst {dimension_numbers = #tpu.dot_dimension_numbers<[1], [1], [0], [0], [0, 0, 1, 0], [], []>} : vector<32x16xbf16>, vector<8x16xbf16>, vector<32x8xf32> -> vector<32x8xf32>
    %c0_3 = arith.constant 0 : index
    %c0_4 = arith.constant 0 : index
    %4 = vector.load %arg3[%c0_3, %c0_4] : memref<32x1xf32, #tpu.memory_space<vmem>>, vector<32x1xf32>
    %5 = vector.broadcast %4 : vector<32x1xf32> to vector<32x8xf32>
    %6 = arith.addf %3, %5 : vector<32x8xf32>
    %cst_5 = arith.constant 0.000000e+00 : f32
    %7 = vector.broadcast %cst_5 : f32 to vector<32x8xf32>
    %8 = arith.maximumf %6, %7 : vector<32x8xf32>
    %c0_6 = arith.constant 0 : index
    %c0_7 = arith.constant 0 : index
    %9 = vector.load %arg4[%c0_6, %c0_7] : memref<32x32xbf16, #tpu.memory_space<vmem>>, vector<32x32xbf16>
    %10 = arith.truncf %8 : vector<32x8xf32> to vector<32x8xbf16>
    %cst_8 = arith.constant dense<0.000000e+00> : vector<32x8xf32>
    %11 = tpu.matmul %9, %10, %cst_8 {dimension_numbers = #tpu.dot_dimension_numbers<[1], [0], [0], [1], [0, 0, 1, 1], [], []>} : vector<32x32xbf16>, vector<32x8xbf16>, vector<32x8xf32> -> vector<32x8xf32>
    %c0_9 = arith.constant 0 : index
    %c0_10 = arith.constant 0 : index
    %12 = vector.load %arg5[%c0_9, %c0_10] : memref<32x1xf32, #tpu.memory_space<vmem>>, vector<32x1xf32>
    %13 = vector.broadcast %12 : vector<32x1xf32> to vector<32x8xf32>
    %14 = arith.addf %11, %13 : vector<32x8xf32>
    %cst_11 = arith.constant 0.000000e+00 : f32
    %15 = vector.broadcast %cst_11 : f32 to vector<32x8xf32>
    %16 = arith.maximumf %14, %15 : vector<32x8xf32>
    %c0_12 = arith.constant 0 : index
    %c0_13 = arith.constant 0 : index
    %17 = vector.load %arg6[%c0_12, %c0_13] : memref<32x32xbf16, #tpu.memory_space<vmem>>, vector<32x32xbf16>
    %18 = arith.truncf %16 : vector<32x8xf32> to vector<32x8xbf16>
    %cst_14 = arith.constant dense<0.000000e+00> : vector<32x8xf32>
    %19 = tpu.matmul %17, %18, %cst_14 {dimension_numbers = #tpu.dot_dimension_numbers<[1], [0], [0], [1], [0, 0, 1, 1], [], []>} : vector<32x32xbf16>, vector<32x8xbf16>, vector<32x8xf32> -> vector<32x8xf32>
    %c0_15 = arith.constant 0 : index
    %c0_16 = arith.constant 0 : index
    %20 = vector.load %arg7[%c0_15, %c0_16] : memref<32x1xf32, #tpu.memory_space<vmem>>, vector<32x1xf32>
    %21 = vector.broadcast %20 : vector<32x1xf32> to vector<32x8xf32>
    %22 = arith.addf %19, %21 : vector<32x8xf32>
    %cst_17 = arith.constant 0.000000e+00 : f32
    %23 = vector.broadcast %cst_17 : f32 to vector<32x8xf32>
    %24 = arith.maximumf %22, %23 : vector<32x8xf32>
    %c0_18 = arith.constant 0 : index
    %c0_19 = arith.constant 0 : index
    %25 = vector.load %arg8[%c0_18, %c0_19] : memref<32x32xbf16, #tpu.memory_space<vmem>>, vector<32x32xbf16>
    %26 = arith.truncf %24 : vector<32x8xf32> to vector<32x8xbf16>
    %cst_20 = arith.constant dense<0.000000e+00> : vector<32x8xf32>
    %27 = tpu.matmul %25, %26, %cst_20 {dimension_numbers = #tpu.dot_dimension_numbers<[1], [0], [0], [1], [0, 0, 1, 1], [], []>} : vector<32x32xbf16>, vector<32x8xbf16>, vector<32x8xf32> -> vector<32x8xf32>
    %c0_21 = arith.constant 0 : index
    %c0_22 = arith.constant 0 : index
    %28 = vector.load %arg9[%c0_21, %c0_22] : memref<32x1xf32, #tpu.memory_space<vmem>>, vector<32x1xf32>
    %29 = vector.broadcast %28 : vector<32x1xf32> to vector<32x8xf32>
    %30 = arith.addf %27, %29 : vector<32x8xf32>
    %cst_23 = arith.constant 0.000000e+00 : f32
    %31 = vector.broadcast %cst_23 : f32 to vector<32x8xf32>
    %32 = arith.maximumf %30, %31 : vector<32x8xf32>
    %c0_24 = arith.constant 0 : index
    %c0_25 = arith.constant 0 : index
    %33 = vector.load %arg10[%c0_24, %c0_25] : memref<32x1xf32, #tpu.memory_space<vmem>>, vector<32x1xf32>
    %34 = vector.broadcast %33 : vector<32x1xf32> to vector<32x8xf32>
    %35 = arith.mulf %32, %34 : vector<32x8xf32>
    %cst_26 = arith.constant dense<0.000000e+00> : vector<8xf32>
    %36 = vector.multi_reduction <add>, %35, %cst_26 [0] : vector<32x8xf32> to vector<8xf32>
    %37 = vector.shape_cast %36 : vector<8xf32> to vector<1x8xf32>
    %c0_27 = arith.constant 0 : index
    %c0_28 = arith.constant 0 : index
    %38 = vector.load %arg11[%c0_27, %c0_28] : memref<1x1xf32, #tpu.memory_space<vmem>>, vector<1x1xf32>
    %39 = vector.broadcast %38 : vector<1x1xf32> to vector<1x8xf32>
    %40 = arith.addf %37, %39 : vector<1x8xf32>
    %c0_29 = arith.constant 0 : index
    %c0_30 = arith.constant 0 : index
    %41 = vector.load %arg12[%c0_29, %c0_30] : memref<1x8xf32, #tpu.memory_space<vmem>>, vector<1x8xf32>
    tpu.vector_store %arg12[%c0_29, %c0_30], %40 {strides = array<i32>} : memref<1x8xf32, #tpu.memory_space<vmem>>, vector<1x8xf32>,
    return
  }
  func.func @transform_0(%arg0: i32) -> (i32, i32) {
    %c0_i32 = arith.constant 0 : i32
    %c0_i32_0 = arith.constant 0 : i32
    return %arg0, %c0_i32 : i32, i32
  }
  func.func @transform_1(%arg0: i32) -> (i32, i32) {
    %c0_i32 = arith.constant 0 : i32
    %c0_i32_0 = arith.constant 0 : i32
    %c0_i32_1 = arith.constant 0 : i32
    return %c0_i32, %c0_i32_0 : i32, i32
  }
  func.func @transform_2(%arg0: i32) -> (i32, i32) {
    %c0_i32 = arith.constant 0 : i32
    %c0_i32_0 = arith.constant 0 : i32
    %c0_i32_1 = arith.constant 0 : i32
    return %c0_i32, %c0_i32_0 : i32, i32
  }
  func.func @transform_3(%arg0: i32) -> (i32, i32) {
    %c0_i32 = arith.constant 0 : i32
    %c0_i32_0 = arith.constant 0 : i32
    %c0_i32_1 = arith.constant 0 : i32
    return %c0_i32, %c0_i32_0 : i32, i32
  }
  func.func @transform_4(%arg0: i32) -> (i32, i32) {
    %c0_i32 = arith.constant 0 : i32
    %c0_i32_0 = arith.constant 0 : i32
    %c0_i32_1 = arith.constant 0 : i32
    return %c0_i32, %c0_i32_0 : i32, i32
  }
  func.func @transform_5(%arg0: i32) -> (i32, i32) {
    %c0_i32 = arith.constant 0 : i32
    %c0_i32_0 = arith.constant 0 : i32
    %c0_i32_1 = arith.constant 0 : i32
    return %c0_i32, %c0_i32_0 : i32, i32
  }
  func.func @transform_6(%arg0: i32) -> (i32, i32) {
    %c0_i32 = arith.constant 0 : i32
    %c0_i32_0 = arith.constant 0 : i32
    %c0_i32_1 = arith.constant 0 : i32
    return %c0_i32, %c0_i32_0 : i32, i32
  }
  func.func @transform_7(%arg0: i32) -> (i32, i32) {
    %c0_i32 = arith.constant 0 : i32
    %c0_i32_0 = arith.constant 0 : i32
    %c0_i32_1 = arith.constant 0 : i32
    return %c0_i32, %c0_i32_0 : i32, i32
  }
  func.func @transform_8(%arg0: i32) -> (i32, i32) {
    %c0_i32 = arith.constant 0 : i32
    %c0_i32_0 = arith.constant 0 : i32
    %c0_i32_1 = arith.constant 0 : i32
    return %c0_i32, %c0_i32_0 : i32, i32
  }
  func.func @transform_9(%arg0: i32) -> (i32, i32) {
    %c0_i32 = arith.constant 0 : i32
    %c0_i32_0 = arith.constant 0 : i32
    %c0_i32_1 = arith.constant 0 : i32
    return %c0_i32, %c0_i32_0 : i32, i32
  }
  func.func @transform_10(%arg0: i32) -> (i32, i32) {
    %c0_i32 = arith.constant 0 : i32
    %c0_i32_0 = arith.constant 0 : i32
    %c0_i32_1 = arith.constant 0 : i32
    return %c0_i32, %c0_i32_0 : i32, i32
  }
  func.func @transform_11(%arg0: i32) -> (i32, i32) {
    %c0_i32 = arith.constant 0 : i32
    %c0_i32_0 = arith.constant 0 : i32
    return %c0_i32, %arg0 : i32, i32
  }
}

module attributes {stable_mosaic.version = 11 : i64} {
  func.func @critic_kernel(%arg0: i32, %arg1: memref<8x16xf32, #tpu.memory_space<vmem>>, %arg2: memref<32x16xbf16, #tpu.memory_space<vmem>>, %arg3: memref<32x1xf32, #tpu.memory_space<vmem>>, %arg4: memref<32x32xbf16, #tpu.memory_space<vmem>>, %arg5: memref<32x1xf32, #tpu.memory_space<vmem>>, %arg6: memref<32x32xbf16, #tpu.memory_space<vmem>>, %arg7: memref<32x1xf32, #tpu.memory_space<vmem>>, %arg8: memref<32x32xbf16, #tpu.memory_space<vmem>>, %arg9: memref<32x1xf32, #tpu.memory_space<vmem>>, %arg10: memref<32x1xf32, #tpu.memory_space<vmem>>, %arg11: memref<1x1xf32, #tpu.memory_space<vmem>>, %arg12: memref<1x8xf32, #tpu.memory_space<vmem>>) attributes {dimension_semantics = [#tpu.dimension_semantics<parallel>], iteration_bounds = array<i64: 1>, scalar_prefetch = 0 : i64, scratch_operands = 0 : i64, tpu.core_type = #tpu.core_type<tc>, window_params = [{transform_indices = @transform_0, window_bounds = array<i64: 8, 16>}, {pipeline_mode = #tpu.pipeline_mode<synchronous>, transform_indices = @transform_1, window_bounds = array<i64: 32, 16>}, {pipeline_mode = #tpu.pipeline_mode<synchronous>, transform_indices = @transform_2, window_bounds = array<i64: 32, 1>}, {pipeline_mode = #tpu.pipeline_mode<synchronous>, transform_indices = @transform_3, window_bounds = array<i64: 32, 32>}, {pipeline_mode = #tpu.pipeline_mode<synchronous>, transform_indices = @transform_4, window_bounds = array<i64: 32, 1>}, {pipeline_mode = #tpu.pipeline_mode<synchronous>, transform_indices = @transform_5, window_bounds = array<i64: 32, 32>}, {pipeline_mode = #tpu.pipeline_mode<synchronous>, transform_indices = @transform_6, window_bounds = array<i64: 32, 1>}, {pipeline_mode = #tpu.pipeline_mode<synchronous>, transform_indices = @transform_7, window_bounds = array<i64: 32, 32>}, {pipeline_mode = #tpu.pipeline_mode<synchronous>, transform_indices = @transform_8, window_bounds = array<i64: 32, 1>}, {pipeline_mode = #tpu.pipeline_mode<synchronous>, transform_indices = @transform_9, window_bounds = array<i64: 32, 1>}, {pipeline_mode = #tpu.pipeline_mode<synchronous>, transform_indices = @transform_10, window_bounds = array<i64: 1, 1>}, {transform_indices = @transform_11, window_bounds = array<i64: 1, 8>}]} {
    %c0 = arith.constant 0 : index
    %c0_0 = arith.constant 0 : index
    %0 = vector.load %arg1[%c0, %c0_0] : memref<8x16xf32, #tpu.memory_space<vmem>>, vector<8x16xf32>
    %1 = arith.truncf %0 : vector<8x16xf32> to vector<8x16xbf16>
    %c0_1 = arith.constant 0 : index
    %c0_2 = arith.constant 0 : index
    %2 = vector.load %arg2[%c0_1, %c0_2] : memref<32x16xbf16, #tpu.memory_space<vmem>>, vector<32x16xbf16>
    %cst = arith.constant dense<0.000000e+00> : vector<32x8xf32>
    %3 = tpu.matmul %2, %1, %cst {dimension_numbers = #tpu.dot_dimension_numbers<[1], [1], [0], [0], [0, 0, 1, 0], [], []>} : vector<32x16xbf16>, vector<8x16xbf16>, vector<32x8xf32> -> vector<32x8xf32>
    %c0_3 = arith.constant 0 : index
    %c0_4 = arith.constant 0 : index
    %4 = vector.load %arg3[%c0_3, %c0_4] : memref<32x1xf32, #tpu.memory_space<vmem>>, vector<32x1xf32>
    %5 = vector.broadcast %4 : vector<32x1xf32> to vector<32x8xf32>
    %6 = arith.addf %3, %5 : vector<32x8xf32>
    %cst_5 = arith.constant 0.000000e+00 : f32
    %7 = vector.broadcast %cst_5 : f32 to vector<32x8xf32>
    %8 = arith.maximumf %6, %7 : vector<32x8xf32>
    %c0_6 = arith.constant 0 : index
    %c0_7 = arith.constant 0 : index
    %9 = vector.load %arg4[%c0_6, %c0_7] : memref<32x32xbf16, #tpu.memory_space<vmem>>, vector<32x32xbf16>
    %10 = arith.truncf %8 : vector<32x8xf32> to vector<32x8xbf16>
    %cst_8 = arith.constant dense<0.000000e+00> : vector<32x8xf32>
    %11 = tpu.matmul %9, %10, %cst_8 {dimension_numbers = #tpu.dot_dimension_numbers<[1], [0], [0], [1], [0, 0, 1, 1], [], []>} : vector<32x32xbf16>, vector<32x8xbf16>, vector<32x8xf32> -> vector<32x8xf32>
    %c0_9 = arith.constant 0 : index
    %c0_10 = arith.constant 0 : index
    %12 = vector.load %arg5[%c0_9, %c0_10] : memref<32x1xf32, #tpu.memory_space<vmem>>, vector<32x1xf32>
    %13 = vector.broadcast %12 : vector<32x1xf32> to vector<32x8xf32>
    %14 = arith.addf %11, %13 : vector<32x8xf32>
    %cst_11 = arith.constant 0.000000e+00 : f32
    %15 = vector.broadcast %cst_11 : f32 to vector<32x8xf32>
    %16 = arith.maximumf %14, %15 : vector<32x8xf32>
    %c0_12 = arith.constant 0 : index
    %c0_13 = arith.constant 0 : index
    %17 = vector.load %arg6[%c0_12, %c0_13] : memref<32x32xbf16, #tpu.memory_space<vmem>>, vector<32x32xbf16>
    %18 = arith.truncf %16 : vector<32x8xf32> to vector<32x8xbf16>
    %cst_14 = arith.constant dense<0.000000e+00> : vector<32x8xf32>
    %19 = tpu.matmul %17, %18, %cst_14 {dimension_numbers = #tpu.dot_dimension_numbers<[1], [0], [0], [1], [0, 0, 1, 1], [], []>} : vector<32x32xbf16>, vector<32x8xbf16>, vector<32x8xf32> -> vector<32x8xf32>
    %c0_15 = arith.constant 0 : index
    %c0_16 = arith.constant 0 : index
    %20 = vector.load %arg7[%c0_15, %c0_16] : memref<32x1xf32, #tpu.memory_space<vmem>>, vector<32x1xf32>
    %21 = vector.broadcast %20 : vector<32x1xf32> to vector<32x8xf32>
    %22 = arith.addf %19, %21 : vector<32x8xf32>
    %cst_17 = arith.constant 0.000000e+00 : f32
    %23 = vector.broadcast %cst_17 : f32 to vector<32x8xf32>
    %24 = arith.maximumf %22, %23 : vector<32x8xf32>
    %c0_18 = arith.constant 0 : index
    %c0_19 = arith.constant 0 : index
    %25 = vector.load %arg8[%c0_18, %c0_19] : memref<32x32xbf16, #tpu.memory_space<vmem>>, vector<32x32xbf16>
    %26 = arith.truncf %24 : vector<32x8xf32> to vector<32x8xbf16>
    %cst_20 = arith.constant dense<0.000000e+00> : vector<32x8xf32>
    %27 = tpu.matmul %25, %26, %cst_20 {dimension_numbers = #tpu.dot_dimension_numbers<[1], [0], [0], [1], [0, 0, 1, 1], [], []>} : vector<32x32xbf16>, vector<32x8xbf16>, vector<32x8xf32> -> vector<32x8xf32>
    %c0_21 = arith.constant 0 : index
    %c0_22 = arith.constant 0 : index
    %28 = vector.load %arg9[%c0_21, %c0_22] : memref<32x1xf32, #tpu.memory_space<vmem>>, vector<32x1xf32>
    %29 = vector.broadcast %28 : vector<32x1xf32> to vector<32x8xf32>
    %30 = arith.addf %27, %29 : vector<32x8xf32>
    %cst_23 = arith.constant 0.000000e+00 : f32
    %31 = vector.broadcast %cst_23 : f32 to vector<32x8xf32>
    %32 = arith.maximumf %30, %31 : vector<32x8xf32>
    %c0_24 = arith.constant 0 : index
    %c0_25 = arith.constant 0 : index
    %33 = vector.load %arg10[%c0_24, %c0_25] : memref<32x1xf32, #tpu.memory_space<vmem>>, vector<32x1xf32>
    %34 = vector.broadcast %33 : vector<32x1xf32> to vector<32x8xf32>
    %35 = arith.mulf %32, %34 : vector<32x8xf32>
    %cst_26 = arith.constant dense<0.000000e+00> : vector<8xf32>
    %36 = vector.multi_reduction <add>, %35, %cst_26 [0] : vector<32x8xf32> to vector<8xf32>
    %37 = vector.shape_cast %36 : vector<8xf32> to vector<1x8xf32>
    %c0_27 = arith.constant 0 : index
    %c0_28 = arith.constant 0 : index
    %38 = vector.load %arg11[%c0_27, %c0_28] : memref<1x1xf32, #tpu.memory_space<vmem>>, vector<1x1xf32>
    %39 = vector.broadcast %38 : vector<1x1xf32> to vector<1x8xf32>
    %40 = arith.addf %37, %39 : vector<1x8xf32>
    %c0_29 = arith.constant 0 : index
    %c0_30 = arith.constant 0 : index
    %41 = vector.load %arg12[%c0_29, %c0_30] : memref<1x8xf32, #tpu.memory_space<vmem>>, vector<1x8xf32>
    tpu.vector_store %arg12[%c0_29, %c0_30], %40 {strides = array<i32>} : memref<1x8xf32, #tpu.memory_space<vmem>>, vector<1x8xf32>,
    return
  }
  func.func @transform_0(%arg0: i32) -> (i32, i32) {
    %c0_i32 = arith.constant 0 : i32
    %c0_i32_0 = arith.constant 0 : i32
    return %arg0, %c0_i32 : i32, i32
  }
  func.func @transform_1(%arg0: i32) -> (i32, i32) {
    %c0_i32 = arith.constant 0 : i32
    %c0_i32_0 = arith.constant 0 : i32
    %c0_i32_1 = arith.constant 0 : i32
    return %c0_i32, %c0_i32_0 : i32, i32
  }
  func.func @transform_2(%arg0: i32) -> (i32, i32) {
    %c0_i32 = arith.constant 0 : i32
    %c0_i32_0 = arith.constant 0 : i32
    %c0_i32_1 = arith.constant 0 : i32
    return %c0_i32, %c0_i32_0 : i32, i32
  }
  func.func @transform_3(%arg0: i32) -> (i32, i32) {
    %c0_i32 = arith.constant 0 : i32
    %c0_i32_0 = arith.constant 0 : i32
    %c0_i32_1 = arith.constant 0 : i32
    return %c0_i32, %c0_i32_0 : i32, i32
  }
  func.func @transform_4(%arg0: i32) -> (i32, i32) {
    %c0_i32 = arith.constant 0 : i32
    %c0_i32_0 = arith.constant 0 : i32
    %c0_i32_1 = arith.constant 0 : i32
    return %c0_i32, %c0_i32_0 : i32, i32
  }
  func.func @transform_5(%arg0: i32) -> (i32, i32) {
    %c0_i32 = arith.constant 0 : i32
    %c0_i32_0 = arith.constant 0 : i32
    %c0_i32_1 = arith.constant 0 : i32
    return %c0_i32, %c0_i32_0 : i32, i32
  }
  func.func @transform_6(%arg0: i32) -> (i32, i32) {
    %c0_i32 = arith.constant 0 : i32
    %c0_i32_0 = arith.constant 0 : i32
    %c0_i32_1 = arith.constant 0 : i32
    return %c0_i32, %c0_i32_0 : i32, i32
  }
  func.func @transform_7(%arg0: i32) -> (i32, i32) {
    %c0_i32 = arith.constant 0 : i32
    %c0_i32_0 = arith.constant 0 : i32
    %c0_i32_1 = arith.constant 0 : i32
    return %c0_i32, %c0_i32_0 : i32, i32
  }
  func.func @transform_8(%arg0: i32) -> (i32, i32) {
    %c0_i32 = arith.constant 0 : i32
    %c0_i32_0 = arith.constant 0 : i32
    %c0_i32_1 = arith.constant 0 : i32
    return %c0_i32, %c0_i32_0 : i32, i32
  }
  func.func @transform_9(%arg0: i32) -> (i32, i32) {
    %c0_i32 = arith.constant 0 : i32
    %c0_i32_0 = arith.constant 0 : i32
    %c0_i32_1 = arith.constant 0 : i32
    return %c0_i32, %c0_i32_0 : i32, i32
  }
  func.func @transform_10(%arg0: i32) -> (i32, i32) {
    %c0_i32 = arith.constant 0 : i32
    %c0_i32_0 = arith.constant 0 : i32
    %c0_i32_1 = arith.constant 0 : i32
    return %c0_i32, %c0_i32_0 : i32, i32
  }
  func.func @transform_11(%arg0: i32) -> (i32, i32) {
    %c0_i32 = arith.constant 0 : i32
    %c0_i32_0 = arith.constant 0 : i32
    return %c0_i32, %arg0 : i32, i32
  }
}

</mosaic_0001>

<llo_original>
// kernel: tpu_custom_call.1
$region0: #{tpu_custom_call.1}
  #allocation0 [shape = 'u32[]', space=smem, size = 0x4, offset = 0x4, fixed_abs, tag = 'smem constant byte address 0x4 - core index']
  #allocation1 [shape = 'u32[144,128]{1,0:T(1,128)}', space=vmem, size = 0x12000, scoped, tag = 'internal scratch']
  #allocation2 [shape = 'f32[1,1]{1,0:T(1,128)S(1)}', space=vmem, size = 0x200, scoped, tag = 'scoped memory for tpu_custom_call.1']
  %s0 = inlined_call_operand.vmem [shape: f32[8,16], index: 0, kind: input, shape index: {}]
  %s1 = inlined_call_operand.vmem [shape: bf16[32,16], index: 1, kind: input, shape index: {}]
  %s2 = inlined_call_operand.vmem [shape: f32[32,1], index: 2, kind: input, shape index: {}]
  %s3 = inlined_call_operand.vmem [shape: bf16[32,32], index: 3, kind: input, shape index: {}]
  %s4 = inlined_call_operand.vmem [shape: f32[32,1], index: 4, kind: input, shape index: {}]
  %s5 = inlined_call_operand.vmem [shape: bf16[32,32], index: 5, kind: input, shape index: {}]
  %s6 = inlined_call_operand.vmem [shape: f32[32,1], index: 6, kind: input, shape index: {}]
  %s7 = inlined_call_operand.vmem [shape: bf16[32,32], index: 7, kind: input, shape index: {}]
  %s8 = inlined_call_operand.vmem [shape: f32[32,1], index: 8, kind: input, shape index: {}]
  %s9 = inlined_call_operand.vmem [shape: f32[32,1], index: 9, kind: input, shape index: {}]
  %s10 = inlined_call_operand.<no memory space> [shape: f32[1,1], index: 10, kind: input, shape index: {}]
  %s11 = inlined_call_operand.hbm [shape: f32[1,8], index: 11, kind: output, shape index: {}]
  %s12 = sld [smem:[#allocation0]]
  $region54: #{tpu_custom_call.1} parent=0
    _
  %s14 = ssub.s32 1, %s12
  %s15 = scalar_select 0, %s14, %s12
  %v16 = vstv %s10
  %17 = vst [vmem:[#allocation2] sm:$0x1] %v16
  $region1: #{tpu_custom_call.1} parent=0
    #allocation3 [shape = 'u8[512]{0}', space=vmem, size = 0x400, scoped, tag = 'output window, operand 0, single buffered']
    #allocation4 [shape = 's32[1]{0}', space=sflag, size = 0x4, scoped, tag = 'scoped memory for tpu_custom_call.1']
    %18 = vsyncpa [#allocation4], 0
    // Predicated region
    $region2: #{tpu_custom_call.1} parent=1 // pred_check
      _
    $region3: #{tpu_custom_call.1} parent=1 // pred_check_branch
      %20 = sbr.rel (0) target = $region5
    $region4: #{tpu_custom_call.1} parent=1 // pred_region
      _
    $region5: #{tpu_custom_call.1} parent=1 // pred_fallthru
      _
    // Predicated region
    $region6: #{tpu_custom_call.1} parent=1 // pred_check
      _
    $region7: #{tpu_custom_call.1} parent=1 // pred_check_branch
      %22 = sbr.rel (0) target = $region9
    $region8: #{tpu_custom_call.1} parent=1 // pred_region
      _
    $region9: #{tpu_custom_call.1} parent=1 // pred_fallthru
      _
    // Predicated region
    $region10: #{tpu_custom_call.1} parent=1 // pred_check
      _
    $region11: #{tpu_custom_call.1} parent=1 // pred_check_branch
      %24 = sbr.rel (0) target = $region13
    $region12: #{tpu_custom_call.1} parent=1 // pred_region
      _
    $region13: #{tpu_custom_call.1} parent=1 // pred_fallthru
      _
    // Predicated region
    $region14: #{tpu_custom_call.1} parent=1 // pred_check
      _
    $region15: #{tpu_custom_call.1} parent=1 // pred_check_branch
      %26 = sbr.rel (0) target = $region17
    $region16: #{tpu_custom_call.1} parent=1 // pred_region
      _
    $region17: #{tpu_custom_call.1} parent=1 // pred_fallthru
      _
    // Predicated region
    $region18: #{tpu_custom_call.1} parent=1 // pred_check
      _
    $region19: #{tpu_custom_call.1} parent=1 // pred_check_branch
      %28 = sbr.rel (0) target = $region21
    $region20: #{tpu_custom_call.1} parent=1 // pred_region
      _
    $region21: #{tpu_custom_call.1} parent=1 // pred_fallthru
      _
    // Predicated region
    $region22: #{tpu_custom_call.1} parent=1 // pred_check
      _
    $region23: #{tpu_custom_call.1} parent=1 // pred_check_branch
      %30 = sbr.rel (0) target = $region25
    $region24: #{tpu_custom_call.1} parent=1 // pred_region
      _
    $region25: #{tpu_custom_call.1} parent=1 // pred_fallthru
      _
    // Predicated region
    $region26: #{tpu_custom_call.1} parent=1 // pred_check
      _
    $region27: #{tpu_custom_call.1} parent=1 // pred_check_branch
      %32 = sbr.rel (0) target = $region29
    $region28: #{tpu_custom_call.1} parent=1 // pred_region
      _
    $region29: #{tpu_custom_call.1} parent=1 // pred_fallthru
      _
    // Predicated region
    $region30: #{tpu_custom_call.1} parent=1 // pred_check
      _
    $region31: #{tpu_custom_call.1} parent=1 // pred_check_branch
      %34 = sbr.rel (0) target = $region33
    $region32: #{tpu_custom_call.1} parent=1 // pred_region
      _
    $region33: #{tpu_custom_call.1} parent=1 // pred_fallthru
      _
    // Predicated region
    $region34: #{tpu_custom_call.1} parent=1 // pred_check
      _
    $region35: #{tpu_custom_call.1} parent=1 // pred_check_branch
      %36 = sbr.rel (0) target = $region37
    $region36: #{tpu_custom_call.1} parent=1 // pred_region
      _
    $region37: #{tpu_custom_call.1} parent=1 // pred_fallthru
      _
    // Predicated region
    $region38: #{tpu_custom_call.1} parent=1 // pred_check
      _
    $region39: #{tpu_custom_call.1} parent=1 // pred_check_branch
      %38 = sbr.rel (0) target = $region41
    $region40: #{tpu_custom_call.1} parent=1 // pred_region
      _
    $region41: #{tpu_custom_call.1} parent=1 // pred_fallthru
      _
    // Predicated region
    $region42: #{tpu_custom_call.1} parent=1 // pred_check
      _
    $region43: #{tpu_custom_call.1} parent=1 // pred_check_branch
      %40 = sbr.rel (0) target = $region45
    $region44: #{tpu_custom_call.1} parent=1 // pred_region
      _
    $region45: #{tpu_custom_call.1} parent=1 // pred_fallthru
      _
    %v42 = vld [vmem:[%s0] sm:$0xff]
    %v43 = vpack.c.bf16 %v42, %v42
    %v44 = vld [vmem:[%s1] sm:$0xf]
    %v45 = vld [vmem:[%s1 + $0x4] sm:$0xf]
    %v46 = vld [vmem:[%s1 + $0x8] sm:$0xf]
    %v47 = vld [vmem:[%s1 + $0xc] sm:$0xf]
    %v48 = vld [vmem:[%s2] sm:$0xff]
    %v49 = vld [vmem:[%s2 + $0x8] sm:$0xff]
    %v50 = vld [vmem:[%s2 + $0x10] sm:$0xff]
    %v51 = vld [vmem:[%s2 + $0x18] sm:$0xff]
    %53 = vset.pattern.permute.xlu0 0
    %54 = vperm.xlu0 %53, %v48
    %v55 = vpop.permute.xlu0 %54
    %58 = vset.pattern.permute.xlu0 0
    %59 = vperm.xlu0 %58, %v49
    %v60 = vpop.permute.xlu0 %59
    %63 = vset.pattern.permute.xlu0 0
    %64 = vperm.xlu0 %63, %v50
    %v65 = vpop.permute.xlu0 %64
    %68 = vset.pattern.permute.xlu0 0
    %69 = vperm.xlu0 %68, %v51
    %v70 = vpop.permute.xlu0 %69
    %v76 = vunpack.c.l.b16 %v44
    %v77 = vunpack.c.l.b16 %v45
    %v78 = vunpack.c.l.b16 %v46
    %v79 = vunpack.c.l.b16 %v47
    %v80 = vpack.c.b16 %v77, %v76
    %v81 = vpack.c.b16 %v79, %v78
    %vm82 = vcmask 130048
    %v84 = vsel %vm82, %v80, 0
    %v87 = vsel %vm82, %v81, 0
    %v90 = vsel %vm82, %v43, 0
    %92 = vmatprep.subr.bf16.mxu0 0
    %93 = vmatpush1.bf16.xpose.msra.mxu0 %v90
    %94 = vmatprep.subr.bf16.mxu0 0
    %95 = vmatpush1.bf16.xpose.msra.mxu0 0
    %96 = vmatprep.subr.bf16.mxu0 0
    %97 = vmatpush1.bf16.xpose.msra.mxu0 0
    %98 = vmatprep.subr.bf16.mxu0 0
    %99 = vmatpush1.bf16.xpose.msra.mxu0 0
    %100 = vmatprep.subr.bf16.mxu0 0
    %101 = vmatpush1.bf16.xpose.msra.mxu0 0
    %102 = vmatprep.subr.bf16.mxu0 0
    %103 = vmatpush1.bf16.xpose.msra.mxu0 0
    %104 = vmatprep.subr.bf16.mxu0 0
    %105 = vmatpush1.bf16.xpose.msra.mxu0 0
    %106 = vmatprep.subr.bf16.mxu0 0
    %107 = vmatpush1.bf16.xpose.msra.mxu0 0
    %108 = vmatprep.subr.bf16.mxu0 0
    %109 = vmatpush1.bf16.xpose.msra.mxu0 0
    %110 = vmatprep.subr.bf16.mxu0 0
    %111 = vmatpush1.bf16.xpose.msra.mxu0 0
    %112 = vmatprep.subr.bf16.mxu0 0
    %113 = vmatpush1.bf16.xpose.msra.mxu0 0
    %114 = vmatprep.subr.bf16.mxu0 0
    %115 = vmatpush1.bf16.xpose.msra.mxu0 0
    %116 = vmatprep.subr.bf16.mxu0 0
    %117 = vmatpush1.bf16.xpose.msra.mxu0 0
    %118 = vmatprep.subr.bf16.mxu0 0
    %119 = vmatpush1.bf16.xpose.msra.mxu0 0
    %120 = vmatprep.subr.bf16.mxu0 0
    %121 = vmatpush1.bf16.xpose.msra.mxu0 0
    %122 = vmatprep.subr.bf16.mxu0 0
    %123 = vmatpush1.bf16.xpose.msra.mxu0 0
    %124 = vmatprep.mubr.bf16.mxu0 0
    %125 = vmatmul.mubr.bf16.gmra.mrb[0].mxu0 %v84
    %v126 = vpop.f32.mrb[0].mxu0
    %v127 = vadd.f32 %v55, %v126
    %v128 = vpop.f32.mrb[0].mxu0
    %v129 = vpop.f32.mrb[0].mxu0
    %v130 = vadd.f32 %v60, %v129
    %v131 = vpop.f32.mrb[0].mxu0
    %132 = vmatprep.mubr.bf16.mxu0 0
    %133 = vmatmul.mubr.bf16.gmra.mrb[0].mxu0 %v87
    %v134 = vpop.f32.mrb[0].mxu0
    %v135 = vadd.f32 %v65, %v134
    %v136 = vpop.f32.mrb[0].mxu0
    %v137 = vpop.f32.mrb[0].mxu0
    %v138 = vadd.f32 %v70, %v137
    %v139 = vpop.f32.mrb[0].mxu0
    %140 = vdwg.mxu0
    %v141 = vmax.f32 %v127, 0.0
    %v142 = vmax.f32 %v130, 0.0
    %v143 = vmax.f32 %v135, 0.0
    %v144 = vmax.f32 %v138, 0.0
    %v145 = vld [vmem:[%s3] sm:$0xf]
    %v146 = vld [vmem:[%s3 + $0x4] sm:$0xf]
    %v147 = vld [vmem:[%s3 + $0x8] sm:$0xf]
    %v148 = vld [vmem:[%s3 + $0xc] sm:$0xf]
    %v149 = vpack.c.bf16 %v142, %v141
    %v150 = vpack.c.bf16 %v144, %v143
    %v151 = vld [vmem:[%s4] sm:$0xff]
    %v152 = vld [vmem:[%s4 + $0x8] sm:$0xff]
    %v153 = vld [vmem:[%s4 + $0x10] sm:$0xff]
    %v154 = vld [vmem:[%s4 + $0x18] sm:$0xff]
    %156 = vset.pattern.permute.xlu0 0
    %157 = vperm.xlu0 %156, %v151
    %v158 = vpop.permute.xlu0 %157
    %161 = vset.pattern.permute.xlu0 0
    %162 = vperm.xlu0 %161, %v152
    %v163 = vpop.permute.xlu0 %162
    %166 = vset.pattern.permute.xlu0 0
    %167 = vperm.xlu0 %166, %v153
    %v168 = vpop.permute.xlu0 %167
    %171 = vset.pattern.permute.xlu0 0
    %172 = vperm.xlu0 %171, %v154
    %v173 = vpop.permute.xlu0 %172
    %v179 = vunpack.c.l.b16 %v145
    %v180 = vunpack.c.l.b16 %v146
    %v181 = vunpack.c.l.b16 %v147
    %v182 = vunpack.c.l.b16 %v148
    %v183 = vpack.c.b16 %v180, %v179
    %v184 = vpack.c.b16 %v182, %v181
    %vm185 = vcmask 261120
    %v187 = vsel %vm185, %v183, 0
    %v190 = vsel %vm185, %v184, 0
    %192 = vmatprep.subr.bf16.mxu0 0
    %193 = vmatpush1.bf16.msra.mxu0 %v149
    %194 = vmatprep.subr.bf16.mxu0 0
    %195 = vmatpush1.bf16.msra.mxu0 %v150
    %196 = vmatprep.subr.bf16.mxu0 0
    %197 = vmatpush1.bf16.msra.mxu0 0
    %198 = vmatprep.subr.bf16.mxu0 0
    %199 = vmatpush1.bf16.msra.mxu0 0
    %200 = vmatprep.subr.bf16.mxu0 0
    %201 = vmatpush1.bf16.msra.mxu0 0
    %202 = vmatprep.subr.bf16.mxu0 0
    %203 = vmatpush1.bf16.msra.mxu0 0
    %204 = vmatprep.subr.bf16.mxu0 0
    %205 = vmatpush1.bf16.msra.mxu0 0
    %206 = vmatprep.subr.bf16.mxu0 0
    %207 = vmatpush1.bf16.msra.mxu0 0
    %208 = vmatprep.subr.bf16.mxu0 0
    %209 = vmatpush1.bf16.msra.mxu0 0
    %210 = vmatprep.subr.bf16.mxu0 0
    %211 = vmatpush1.bf16.msra.mxu0 0
    %212 = vmatprep.subr.bf16.mxu0 0
    %213 = vmatpush1.bf16.msra.mxu0 0
    %214 = vmatprep.subr.bf16.mxu0 0
    %215 = vmatpush1.bf16.msra.mxu0 0
    %216 = vmatprep.subr.bf16.mxu0 0
    %217 = vmatpush1.bf16.msra.mxu0 0
    %218 = vmatprep.subr.bf16.mxu0 0
    %219 = vmatpush1.bf16.msra.mxu0 0
    %220 = vmatprep.subr.bf16.mxu0 0
    %221 = vmatpush1.bf16.msra.mxu0 0
    %222 = vmatprep.subr.bf16.mxu0 0
    %223 = vmatpush1.bf16.msra.mxu0 0
    %224 = vmatprep.mubr.bf16.mxu0 0
    %225 = vmatmul.mubr.bf16.gmra.mrb[0].mxu0 %v187
    %v226 = vpop.f32.mrb[0].mxu0
    %v227 = vadd.f32 %v158, %v226
    %v228 = vpop.f32.mrb[0].mxu0
    %v229 = vpop.f32.mrb[0].mxu0
    %v230 = vadd.f32 %v163, %v229
    %v231 = vpop.f32.mrb[0].mxu0
    %232 = vmatprep.mubr.bf16.mxu0 0
    %233 = vmatmul.mubr.bf16.gmra.mrb[0].mxu0 %v190
    %v234 = vpop.f32.mrb[0].mxu0
    %v235 = vadd.f32 %v168, %v234
    %v236 = vpop.f32.mrb[0].mxu0
    %v237 = vpop.f32.mrb[0].mxu0
    %v238 = vadd.f32 %v173, %v237
    %v239 = vpop.f32.mrb[0].mxu0
    %240 = vdwg.mxu0
    %v241 = vmax.f32 %v227, 0.0
    %v242 = vmax.f32 %v230, 0.0
    %v243 = vmax.f32 %v235, 0.0
    %v244 = vmax.f32 %v238, 0.0
    %v245 = vld [vmem:[%s5] sm:$0xf]
    %v246 = vld [vmem:[%s5 + $0x4] sm:$0xf]
    %v247 = vld [vmem:[%s5 + $0x8] sm:$0xf]
    %v248 = vld [vmem:[%s5 + $0xc] sm:$0xf]
    %v249 = vpack.c.bf16 %v242, %v241
    %v250 = vpack.c.bf16 %v244, %v243
    %v251 = vld [vmem:[%s6] sm:$0xff]
    %v252 = vld [vmem:[%s6 + $0x8] sm:$0xff]
    %v253 = vld [vmem:[%s6 + $0x10] sm:$0xff]
    %v254 = vld [vmem:[%s6 + $0x18] sm:$0xff]
    %256 = vset.pattern.permute.xlu0 0
    %257 = vperm.xlu0 %256, %v251
    %v258 = vpop.permute.xlu0 %257
    %261 = vset.pattern.permute.xlu0 0
    %262 = vperm.xlu0 %261, %v252
    %v263 = vpop.permute.xlu0 %262
    %266 = vset.pattern.permute.xlu0 0
    %267 = vperm.xlu0 %266, %v253
    %v268 = vpop.permute.xlu0 %267
    %271 = vset.pattern.permute.xlu0 0
    %272 = vperm.xlu0 %271, %v254
    %v273 = vpop.permute.xlu0 %272
    %v279 = vunpack.c.l.b16 %v245
    %v280 = vunpack.c.l.b16 %v246
    %v281 = vunpack.c.l.b16 %v247
    %v282 = vunpack.c.l.b16 %v248
    %v283 = vpack.c.b16 %v280, %v279
    %v284 = vpack.c.b16 %v282, %v281
    %v286 = vsel %vm185, %v283, 0
    %v289 = vsel %vm185, %v284, 0
    %291 = vmatprep.subr.bf16.mxu0 0
    %292 = vmatpush1.bf16.msra.mxu0 %v249
    %293 = vmatprep.subr.bf16.mxu0 0
    %294 = vmatpush1.bf16.msra.mxu0 %v250
    %295 = vmatprep.subr.bf16.mxu0 0
    %296 = vmatpush1.bf16.msra.mxu0 0
    %297 = vmatprep.subr.bf16.mxu0 0
    %298 = vmatpush1.bf16.msra.mxu0 0
    %299 = vmatprep.subr.bf16.mxu0 0
    %300 = vmatpush1.bf16.msra.mxu0 0
    %301 = vmatprep.subr.bf16.mxu0 0
    %302 = vmatpush1.bf16.msra.mxu0 0
    %303 = vmatprep.subr.bf16.mxu0 0
    %304 = vmatpush1.bf16.msra.mxu0 0
    %305 = vmatprep.subr.bf16.mxu0 0
    %306 = vmatpush1.bf16.msra.mxu0 0
    %307 = vmatprep.subr.bf16.mxu0 0
    %308 = vmatpush1.bf16.msra.mxu0 0
    %309 = vmatprep.subr.bf16.mxu0 0
    %310 = vmatpush1.bf16.msra.mxu0 0
    %311 = vmatprep.subr.bf16.mxu0 0
    %312 = vmatpush1.bf16.msra.mxu0 0
    %313 = vmatprep.subr.bf16.mxu0 0
    %314 = vmatpush1.bf16.msra.mxu0 0
    %315 = vmatprep.subr.bf16.mxu0 0
    %316 = vmatpush1.bf16.msra.mxu0 0
    %317 = vmatprep.subr.bf16.mxu0 0
    %318 = vmatpush1.bf16.msra.mxu0 0
    %319 = vmatprep.subr.bf16.mxu0 0
    %320 = vmatpush1.bf16.msra.mxu0 0
    %321 = vmatprep.subr.bf16.mxu0 0
    %322 = vmatpush1.bf16.msra.mxu0 0
    %323 = vmatprep.mubr.bf16.mxu0 0
    %324 = vmatmul.mubr.bf16.gmra.mrb[0].mxu0 %v286
    %v325 = vpop.f32.mrb[0].mxu0
    %v326 = vadd.f32 %v258, %v325
    %v327 = vpop.f32.mrb[0].mxu0
    %v328 = vpop.f32.mrb[0].mxu0
    %v329 = vadd.f32 %v263, %v328
    %v330 = vpop.f32.mrb[0].mxu0
    %331 = vmatprep.mubr.bf16.mxu0 0
    %332 = vmatmul.mubr.bf16.gmra.mrb[0].mxu0 %v289
    %v333 = vpop.f32.mrb[0].mxu0
    %v334 = vadd.f32 %v268, %v333
    %v335 = vpop.f32.mrb[0].mxu0
    %v336 = vpop.f32.mrb[0].mxu0
    %v337 = vadd.f32 %v273, %v336
    %v338 = vpop.f32.mrb[0].mxu0
    %339 = vdwg.mxu0
    %v340 = vmax.f32 %v326, 0.0
    %v341 = vmax.f32 %v329, 0.0
    %v342 = vmax.f32 %v334, 0.0
    %v343 = vmax.f32 %v337, 0.0
    %v344 = vld [vmem:[%s7] sm:$0xf]
    %v345 = vld [vmem:[%s7 + $0x4] sm:$0xf]
    %v346 = vld [vmem:[%s7 + $0x8] sm:$0xf]
    %v347 = vld [vmem:[%s7 + $0xc] sm:$0xf]
    %v348 = vpack.c.bf16 %v341, %v340
    %v349 = vpack.c.bf16 %v343, %v342
    %v350 = vld [vmem:[%s8] sm:$0xff]
    %v351 = vld [vmem:[%s8 + $0x8] sm:$0xff]
    %v352 = vld [vmem:[%s8 + $0x10] sm:$0xff]
    %v353 = vld [vmem:[%s8 + $0x18] sm:$0xff]
    %355 = vset.pattern.permute.xlu0 0
    %356 = vperm.xlu0 %355, %v350
    %v357 = vpop.permute.xlu0 %356
    %360 = vset.pattern.permute.xlu0 0
    %361 = vperm.xlu0 %360, %v351
    %v362 = vpop.permute.xlu0 %361
    %365 = vset.pattern.permute.xlu0 0
    %366 = vperm.xlu0 %365, %v352
    %v367 = vpop.permute.xlu0 %366
    %370 = vset.pattern.permute.xlu0 0
    %371 = vperm.xlu0 %370, %v353
    %v372 = vpop.permute.xlu0 %371
    %v378 = vunpack.c.l.b16 %v344
    %v379 = vunpack.c.l.b16 %v345
    %v380 = vunpack.c.l.b16 %v346
    %v381 = vunpack.c.l.b16 %v347
    %v382 = vpack.c.b16 %v379, %v378
    %v383 = vpack.c.b16 %v381, %v380
    %v385 = vsel %vm185, %v382, 0
    %v388 = vsel %vm185, %v383, 0
    %390 = vmatprep.subr.bf16.mxu0 0
    %391 = vmatpush1.bf16.msra.mxu0 %v348
    %392 = vmatprep.subr.bf16.mxu0 0
    %393 = vmatpush1.bf16.msra.mxu0 %v349
    %394 = vmatprep.subr.bf16.mxu0 0
    %395 = vmatpush1.bf16.msra.mxu0 0
    %396 = vmatprep.subr.bf16.mxu0 0
    %397 = vmatpush1.bf16.msra.mxu0 0
    %398 = vmatprep.subr.bf16.mxu0 0
    %399 = vmatpush1.bf16.msra.mxu0 0
    %400 = vmatprep.subr.bf16.mxu0 0
    %401 = vmatpush1.bf16.msra.mxu0 0
    %402 = vmatprep.subr.bf16.mxu0 0
    %403 = vmatpush1.bf16.msra.mxu0 0
    %404 = vmatprep.subr.bf16.mxu0 0
    %405 = vmatpush1.bf16.msra.mxu0 0
    %406 = vmatprep.subr.bf16.mxu0 0
    %407 = vmatpush1.bf16.msra.mxu0 0
    %408 = vmatprep.subr.bf16.mxu0 0
    %409 = vmatpush1.bf16.msra.mxu0 0
    %410 = vmatprep.subr.bf16.mxu0 0
    %411 = vmatpush1.bf16.msra.mxu0 0
    %412 = vmatprep.subr.bf16.mxu0 0
    %413 = vmatpush1.bf16.msra.mxu0 0
    %414 = vmatprep.subr.bf16.mxu0 0
    %415 = vmatpush1.bf16.msra.mxu0 0
    %416 = vmatprep.subr.bf16.mxu0 0
    %417 = vmatpush1.bf16.msra.mxu0 0
    %418 = vmatprep.subr.bf16.mxu0 0
    %419 = vmatpush1.bf16.msra.mxu0 0
    %420 = vmatprep.subr.bf16.mxu0 0
    %421 = vmatpush1.bf16.msra.mxu0 0
    %422 = vmatprep.mubr.bf16.mxu0 0
    %423 = vmatmul.mubr.bf16.gmra.mrb[0].mxu0 %v385
    %v424 = vpop.f32.mrb[0].mxu0
    %v425 = vadd.f32 %v357, %v424
    %v426 = vpop.f32.mrb[0].mxu0
    %v427 = vpop.f32.mrb[0].mxu0
    %v428 = vadd.f32 %v362, %v427
    %v429 = vpop.f32.mrb[0].mxu0
    %430 = vmatprep.mubr.bf16.mxu0 0
    %431 = vmatmul.mubr.bf16.gmra.mrb[0].mxu0 %v388
    %v432 = vpop.f32.mrb[0].mxu0
    %v433 = vadd.f32 %v367, %v432
    %v434 = vpop.f32.mrb[0].mxu0
    %v435 = vpop.f32.mrb[0].mxu0
    %v436 = vadd.f32 %v372, %v435
    %v437 = vpop.f32.mrb[0].mxu0
    %438 = vdwg.mxu0
    %v439 = vmax.f32 %v425, 0.0
    %v440 = vmax.f32 %v428, 0.0
    %v441 = vmax.f32 %v433, 0.0
    %v442 = vmax.f32 %v436, 0.0
    %v443 = vld [vmem:[%s9] sm:$0xff]
    %v444 = vld [vmem:[%s9 + $0x8] sm:$0xff]
    %v445 = vld [vmem:[%s9 + $0x10] sm:$0xff]
    %v446 = vld [vmem:[%s9 + $0x18] sm:$0xff]
    %448 = vset.pattern.permute.xlu0 0
    %449 = vperm.xlu0 %448, %v443
    %v450 = vpop.permute.xlu0 %449
    %453 = vset.pattern.permute.xlu0 0
    %454 = vperm.xlu0 %453, %v444
    %v455 = vpop.permute.xlu0 %454
    %458 = vset.pattern.permute.xlu0 0
    %459 = vperm.xlu0 %458, %v445
    %v460 = vpop.permute.xlu0 %459
    %463 = vset.pattern.permute.xlu0 0
    %464 = vperm.xlu0 %463, %v446
    %v465 = vpop.permute.xlu0 %464
    %v467 = vmul.f32 %v439, %v450
    %v468 = vmul.f32 %v440, %v455
    %v469 = vmul.f32 %v441, %v460
    %v470 = vmul.f32 %v442, %v465
    %vm471 = vcmask 64512
    %v472 = vsel %vm471, %v467, 0.0
    %v473 = vsel %vm471, %v468, 0.0
    %v474 = vadd.f32 %v472, %v473
    %v475 = vsel %vm471, %v469, 0.0
    %v476 = vadd.f32 %v474, %v475
    %v477 = vsel %vm471, %v470, 0.0
    %v478 = vadd.f32 %v476, %v477
    %v479 = vrot.slane %v478, 4
    %v480 = vadd.f32 %v478, %v479
    %v481 = vrot.slane %v480, 2
    %v482 = vadd.f32 %v480, %v481
    %v483 = vrot.slane %v482, 1
    %v484 = vadd.f32 %v482, %v483
    %v485 = vld [vmem:[#allocation2] sm:$0x1]
    %487 = vset.pattern.permute.xlu0 0
    %488 = vperm.xlu0 %487, %v485
    %v489 = vpop.permute.xlu0 %488
    %v491 = vlaneseq
    %v492 = vshrl.u32 %v491, 7
    %v493 = vsub.s32 0, %v492
    %v494 = vrot.slane %v489, %v493
    %v495 = vadd.f32 %v484, %v494
    %vm496 = vcmask 57344
    %497 = vst.msk [vmem:[#allocation3] sm:$0x1] %vm496, %v495
    // Predicated region
    $region46: #{tpu_custom_call.1} parent=1 // pred_check
      _
    $region47: #{tpu_custom_call.1} parent=1 // pred_check_branch
      %499 = sbr.rel (0) target = $region49
    $region48: #{tpu_custom_call.1} parent=1 // pred_region
      %s501 = ssub.s32 16, 16
      %502 = vsyncadd [#allocation4], %s501
      %s504 = sshll.u32 [#allocation3], 4
      %s505 = int_to_ptr.vmem [resolvable:$true] %s504
      %507 = dma.vmem_to_hbm [thread:$0]  %s505, 16, %s11, [#allocation4]
    $region49: #{tpu_custom_call.1} parent=1 // pred_fallthru
      _
    // Predicated region
    $region50: #{tpu_custom_call.1} parent=1 // pred_check
      _
    $region51: #{tpu_custom_call.1} parent=1 // pred_check_branch
      %509 = sbr.rel (0) target = $region53
    $region52: #{tpu_custom_call.1} parent=1 // pred_region
      %510 = dma.done [#allocation4], 16
    $region53: #{tpu_custom_call.1} parent=1 // pred_fallthru
      _
    %511 = vsyncpa [#allocation4], 1

// kernel: tpu_custom_call.1
$region0: #{tpu_custom_call.1}
  #allocation0 [shape = 'u32[]', space=smem, size = 0x4, offset = 0x4, fixed_abs, tag = 'smem constant byte address 0x4 - core index']
  #allocation1 [shape = 'u32[144,128]{1,0:T(1,128)}', space=vmem, size = 0x12000, scoped, tag = 'internal scratch']
  #allocation2 [shape = 'f32[1,1]{1,0:T(1,128)S(1)}', space=vmem, size = 0x200, scoped, tag = 'scoped memory for tpu_custom_call.1']
  %s0 = inlined_call_operand.vmem [shape: f32[8,16], index: 0, kind: input, shape index: {}]
  %s1 = inlined_call_operand.vmem [shape: bf16[32,16], index: 1, kind: input, shape index: {}]
  %s2 = inlined_call_operand.vmem [shape: f32[32,1], index: 2, kind: input, shape index: {}]
  %s3 = inlined_call_operand.vmem [shape: bf16[32,32], index: 3, kind: input, shape index: {}]
  %s4 = inlined_call_operand.vmem [shape: f32[32,1], index: 4, kind: input, shape index: {}]
  %s5 = inlined_call_operand.vmem [shape: bf16[32,32], index: 5, kind: input, shape index: {}]
  %s6 = inlined_call_operand.vmem [shape: f32[32,1], index: 6, kind: input, shape index: {}]
  %s7 = inlined_call_operand.vmem [shape: bf16[32,32], index: 7, kind: input, shape index: {}]
  %s8 = inlined_call_operand.vmem [shape: f32[32,1], index: 8, kind: input, shape index: {}]
  %s9 = inlined_call_operand.vmem [shape: f32[32,1], index: 9, kind: input, shape index: {}]
  %s10 = inlined_call_operand.<no memory space> [shape: f32[1,1], index: 10, kind: input, shape index: {}]
  %s11 = inlined_call_operand.hbm [shape: f32[1,8], index: 11, kind: output, shape index: {}]
  %s12 = sld [smem:[#allocation0]]
  $region54: #{tpu_custom_call.1} parent=0
    _
  %s14 = ssub.s32 1, %s12
  %s15 = scalar_select 0, %s14, %s12
  %v16 = vstv %s10
  %17 = vst [vmem:[#allocation2] sm:$0x1] %v16
  $region1: #{tpu_custom_call.1} parent=0
    #allocation3 [shape = 'u8[512]{0}', space=vmem, size = 0x400, scoped, tag = 'output window, operand 0, single buffered']
    #allocation4 [shape = 's32[1]{0}', space=sflag, size = 0x4, scoped, tag = 'scoped memory for tpu_custom_call.1']
    %18 = vsyncpa [#allocation4], 0
    // Predicated region
    $region2: #{tpu_custom_call.1} parent=1 // pred_check
      _
    $region3: #{tpu_custom_call.1} parent=1 // pred_check_branch
      %20 = sbr.rel (0) target = $region5
    $region4: #{tpu_custom_call.1} parent=1 // pred_region
      _
    $region5: #{tpu_custom_call.1} parent=1 // pred_fallthru
      _
    // Predicated region
    $region6: #{tpu_custom_call.1} parent=1 // pred_check
      _
    $region7: #{tpu_custom_call.1} parent=1 // pred_check_branch
      %22 = sbr.rel (0) target = $region9
    $region8: #{tpu_custom_call.1} parent=1 // pred_region
      _
    $region9: #{tpu_custom_call.1} parent=1 // pred_fallthru
      _
    // Predicated region
    $region10: #{tpu_custom_call.1} parent=1 // pred_check
      _
    $region11: #{tpu_custom_call.1} parent=1 // pred_check_branch
      %24 = sbr.rel (0) target = $region13
    $region12: #{tpu_custom_call.1} parent=1 // pred_region
      _
    $region13: #{tpu_custom_call.1} parent=1 // pred_fallthru
      _
    // Predicated region
    $region14: #{tpu_custom_call.1} parent=1 // pred_check
      _
    $region15: #{tpu_custom_call.1} parent=1 // pred_check_branch
      %26 = sbr.rel (0) target = $region17
    $region16: #{tpu_custom_call.1} parent=1 // pred_region
      _
    $region17: #{tpu_custom_call.1} parent=1 // pred_fallthru
      _
    // Predicated region
    $region18: #{tpu_custom_call.1} parent=1 // pred_check
      _
    $region19: #{tpu_custom_call.1} parent=1 // pred_check_branch
      %28 = sbr.rel (0) target = $region21
    $region20: #{tpu_custom_call.1} parent=1 // pred_region
      _
    $region21: #{tpu_custom_call.1} parent=1 // pred_fallthru
      _
    // Predicated region
    $region22: #{tpu_custom_call.1} parent=1 // pred_check
      _
    $region23: #{tpu_custom_call.1} parent=1 // pred_check_branch
      %30 = sbr.rel (0) target = $region25
    $region24: #{tpu_custom_call.1} parent=1 // pred_region
      _
    $region25: #{tpu_custom_call.1} parent=1 // pred_fallthru
      _
    // Predicated region
    $region26: #{tpu_custom_call.1} parent=1 // pred_check
      _
    $region27: #{tpu_custom_call.1} parent=1 // pred_check_branch
      %32 = sbr.rel (0) target = $region29
    $region28: #{tpu_custom_call.1} parent=1 // pred_region
      _
    $region29: #{tpu_custom_call.1} parent=1 // pred_fallthru
      _
    // Predicated region
    $region30: #{tpu_custom_call.1} parent=1 // pred_check
      _
    $region31: #{tpu_custom_call.1} parent=1 // pred_check_branch
      %34 = sbr.rel (0) target = $region33
    $region32: #{tpu_custom_call.1} parent=1 // pred_region
      _
    $region33: #{tpu_custom_call.1} parent=1 // pred_fallthru
      _
    // Predicated region
    $region34: #{tpu_custom_call.1} parent=1 // pred_check
      _
    $region35: #{tpu_custom_call.1} parent=1 // pred_check_branch
      %36 = sbr.rel (0) target = $region37
    $region36: #{tpu_custom_call.1} parent=1 // pred_region
      _
    $region37: #{tpu_custom_call.1} parent=1 // pred_fallthru
      _
    // Predicated region
    $region38: #{tpu_custom_call.1} parent=1 // pred_check
      _
    $region39: #{tpu_custom_call.1} parent=1 // pred_check_branch
      %38 = sbr.rel (0) target = $region41
    $region40: #{tpu_custom_call.1} parent=1 // pred_region
      _
    $region41: #{tpu_custom_call.1} parent=1 // pred_fallthru
      _
    // Predicated region
    $region42: #{tpu_custom_call.1} parent=1 // pred_check
      _
    $region43: #{tpu_custom_call.1} parent=1 // pred_check_branch
      %40 = sbr.rel (0) target = $region45
    $region44: #{tpu_custom_call.1} parent=1 // pred_region
      _
    $region45: #{tpu_custom_call.1} parent=1 // pred_fallthru
      _
    %v42 = vld [vmem:[%s0] sm:$0xff]
    %v43 = vpack.c.bf16 %v42, %v42
    %v44 = vld [vmem:[%s1] sm:$0xf]
    %v45 = vld [vmem:[%s1 + $0x4] sm:$0xf]
    %v46 = vld [vmem:[%s1 + $0x8] sm:$0xf]
    %v47 = vld [vmem:[%s1 + $0xc] sm:$0xf]
    %v48 = vld [vmem:[%s2] sm:$0xff]
    %v49 = vld [vmem:[%s2 + $0x8] sm:$0xff]
    %v50 = vld [vmem:[%s2 + $0x10] sm:$0xff]
    %v51 = vld [vmem:[%s2 + $0x18] sm:$0xff]
    %53 = vset.pattern.permute.xlu0 0
    %54 = vperm.xlu0 %53, %v48
    %v55 = vpop.permute.xlu0 %54
    %58 = vset.pattern.permute.xlu0 0
    %59 = vperm.xlu0 %58, %v49
    %v60 = vpop.permute.xlu0 %59
    %63 = vset.pattern.permute.xlu0 0
    %64 = vperm.xlu0 %63, %v50
    %v65 = vpop.permute.xlu0 %64
    %68 = vset.pattern.permute.xlu0 0
    %69 = vperm.xlu0 %68, %v51
    %v70 = vpop.permute.xlu0 %69
    %v76 = vunpack.c.l.b16 %v44
    %v77 = vunpack.c.l.b16 %v45
    %v78 = vunpack.c.l.b16 %v46
    %v79 = vunpack.c.l.b16 %v47
    %v80 = vpack.c.b16 %v77, %v76
    %v81 = vpack.c.b16 %v79, %v78
    %vm82 = vcmask 130048
    %v84 = vsel %vm82, %v80, 0
    %v87 = vsel %vm82, %v81, 0
    %v90 = vsel %vm82, %v43, 0
    %92 = vmatprep.subr.bf16.mxu0 0
    %93 = vmatpush1.bf16.xpose.msra.mxu0 %v90
    %94 = vmatprep.subr.bf16.mxu0 0
    %95 = vmatpush1.bf16.xpose.msra.mxu0 0
    %96 = vmatprep.subr.bf16.mxu0 0
    %97 = vmatpush1.bf16.xpose.msra.mxu0 0
    %98 = vmatprep.subr.bf16.mxu0 0
    %99 = vmatpush1.bf16.xpose.msra.mxu0 0
    %100 = vmatprep.subr.bf16.mxu0 0
    %101 = vmatpush1.bf16.xpose.msra.mxu0 0
    %102 = vmatprep.subr.bf16.mxu0 0
    %103 = vmatpush1.bf16.xpose.msra.mxu0 0
    %104 = vmatprep.subr.bf16.mxu0 0
    %105 = vmatpush1.bf16.xpose.msra.mxu0 0
    %106 = vmatprep.subr.bf16.mxu0 0
    %107 = vmatpush1.bf16.xpose.msra.mxu0 0
    %108 = vmatprep.subr.bf16.mxu0 0
    %109 = vmatpush1.bf16.xpose.msra.mxu0 0
    %110 = vmatprep.subr.bf16.mxu0 0
    %111 = vmatpush1.bf16.xpose.msra.mxu0 0
    %112 = vmatprep.subr.bf16.mxu0 0
    %113 = vmatpush1.bf16.xpose.msra.mxu0 0
    %114 = vmatprep.subr.bf16.mxu0 0
    %115 = vmatpush1.bf16.xpose.msra.mxu0 0
    %116 = vmatprep.subr.bf16.mxu0 0
    %117 = vmatpush1.bf16.xpose.msra.mxu0 0
    %118 = vmatprep.subr.bf16.mxu0 0
    %119 = vmatpush1.bf16.xpose.msra.mxu0 0
    %120 = vmatprep.subr.bf16.mxu0 0
    %121 = vmatpush1.bf16.xpose.msra.mxu0 0
    %122 = vmatprep.subr.bf16.mxu0 0
    %123 = vmatpush1.bf16.xpose.msra.mxu0 0
    %124 = vmatprep.mubr.bf16.mxu0 0
    %125 = vmatmul.mubr.bf16.gmra.mrb[0].mxu0 %v84
    %v126 = vpop.f32.mrb[0].mxu0
    %v127 = vadd.f32 %v55, %v126
    %v128 = vpop.f32.mrb[0].mxu0
    %v129 = vpop.f32.mrb[0].mxu0
    %v130 = vadd.f32 %v60, %v129
    %v131 = vpop.f32.mrb[0].mxu0
    %132 = vmatprep.mubr.bf16.mxu0 0
    %133 = vmatmul.mubr.bf16.gmra.mrb[0].mxu0 %v87
    %v134 = vpop.f32.mrb[0].mxu0
    %v135 = vadd.f32 %v65, %v134
    %v136 = vpop.f32.mrb[0].mxu0
    %v137 = vpop.f32.mrb[0].mxu0
    %v138 = vadd.f32 %v70, %v137
    %v139 = vpop.f32.mrb[0].mxu0
    %140 = vdwg.mxu0
    %v141 = vmax.f32 %v127, 0.0
    %v142 = vmax.f32 %v130, 0.0
    %v143 = vmax.f32 %v135, 0.0
    %v144 = vmax.f32 %v138, 0.0
    %v145 = vld [vmem:[%s3] sm:$0xf]
    %v146 = vld [vmem:[%s3 + $0x4] sm:$0xf]
    %v147 = vld [vmem:[%s3 + $0x8] sm:$0xf]
    %v148 = vld [vmem:[%s3 + $0xc] sm:$0xf]
    %v149 = vpack.c.bf16 %v142, %v141
    %v150 = vpack.c.bf16 %v144, %v143
    %v151 = vld [vmem:[%s4] sm:$0xff]
    %v152 = vld [vmem:[%s4 + $0x8] sm:$0xff]
    %v153 = vld [vmem:[%s4 + $0x10] sm:$0xff]
    %v154 = vld [vmem:[%s4 + $0x18] sm:$0xff]
    %156 = vset.pattern.permute.xlu0 0
    %157 = vperm.xlu0 %156, %v151
    %v158 = vpop.permute.xlu0 %157
    %161 = vset.pattern.permute.xlu0 0
    %162 = vperm.xlu0 %161, %v152
    %v163 = vpop.permute.xlu0 %162
    %166 = vset.pattern.permute.xlu0 0
    %167 = vperm.xlu0 %166, %v153
    %v168 = vpop.permute.xlu0 %167
    %171 = vset.pattern.permute.xlu0 0
    %172 = vperm.xlu0 %171, %v154
    %v173 = vpop.permute.xlu0 %172
    %v179 = vunpack.c.l.b16 %v145
    %v180 = vunpack.c.l.b16 %v146
    %v181 = vunpack.c.l.b16 %v147
    %v182 = vunpack.c.l.b16 %v148
    %v183 = vpack.c.b16 %v180, %v179
    %v184 = vpack.c.b16 %v182, %v181
    %vm185 = vcmask 261120
    %v187 = vsel %vm185, %v183, 0
    %v190 = vsel %vm185, %v184, 0
    %192 = vmatprep.subr.bf16.mxu0 0
    %193 = vmatpush1.bf16.msra.mxu0 %v149
    %194 = vmatprep.subr.bf16.mxu0 0
    %195 = vmatpush1.bf16.msra.mxu0 %v150
    %196 = vmatprep.subr.bf16.mxu0 0
    %197 = vmatpush1.bf16.msra.mxu0 0
    %198 = vmatprep.subr.bf16.mxu0 0
    %199 = vmatpush1.bf16.msra.mxu0 0
    %200 = vmatprep.subr.bf16.mxu0 0
    %201 = vmatpush1.bf16.msra.mxu0 0
    %202 = vmatprep.subr.bf16.mxu0 0
    %203 = vmatpush1.bf16.msra.mxu0 0
    %204 = vmatprep.subr.bf16.mxu0 0
    %205 = vmatpush1.bf16.msra.mxu0 0
    %206 = vmatprep.subr.bf16.mxu0 0
    %207 = vmatpush1.bf16.msra.mxu0 0
    %208 = vmatprep.subr.bf16.mxu0 0
    %209 = vmatpush1.bf16.msra.mxu0 0
    %210 = vmatprep.subr.bf16.mxu0 0
    %211 = vmatpush1.bf16.msra.mxu0 0
    %212 = vmatprep.subr.bf16.mxu0 0
    %213 = vmatpush1.bf16.msra.mxu0 0
    %214 = vmatprep.subr.bf16.mxu0 0
    %215 = vmatpush1.bf16.msra.mxu0 0
    %216 = vmatprep.subr.bf16.mxu0 0
    %217 = vmatpush1.bf16.msra.mxu0 0
    %218 = vmatprep.subr.bf16.mxu0 0
    %219 = vmatpush1.bf16.msra.mxu0 0
    %220 = vmatprep.subr.bf16.mxu0 0
    %221 = vmatpush1.bf16.msra.mxu0 0
    %222 = vmatprep.subr.bf16.mxu0 0
    %223 = vmatpush1.bf16.msra.mxu0 0
    %224 = vmatprep.mubr.bf16.mxu0 0
    %225 = vmatmul.mubr.bf16.gmra.mrb[0].mxu0 %v187
    %v226 = vpop.f32.mrb[0].mxu0
    %v227 = vadd.f32 %v158, %v226
    %v228 = vpop.f32.mrb[0].mxu0
    %v229 = vpop.f32.mrb[0].mxu0
    %v230 = vadd.f32 %v163, %v229
    %v231 = vpop.f32.mrb[0].mxu0
    %232 = vmatprep.mubr.bf16.mxu0 0
    %233 = vmatmul.mubr.bf16.gmra.mrb[0].mxu0 %v190
    %v234 = vpop.f32.mrb[0].mxu0
    %v235 = vadd.f32 %v168, %v234
    %v236 = vpop.f32.mrb[0].mxu0
    %v237 = vpop.f32.mrb[0].mxu0
    %v238 = vadd.f32 %v173, %v237
    %v239 = vpop.f32.mrb[0].mxu0
    %240 = vdwg.mxu0
    %v241 = vmax.f32 %v227, 0.0
    %v242 = vmax.f32 %v230, 0.0
    %v243 = vmax.f32 %v235, 0.0
    %v244 = vmax.f32 %v238, 0.0
    %v245 = vld [vmem:[%s5] sm:$0xf]
    %v246 = vld [vmem:[%s5 + $0x4] sm:$0xf]
    %v247 = vld [vmem:[%s5 + $0x8] sm:$0xf]
    %v248 = vld [vmem:[%s5 + $0xc] sm:$0xf]
    %v249 = vpack.c.bf16 %v242, %v241
    %v250 = vpack.c.bf16 %v244, %v243
    %v251 = vld [vmem:[%s6] sm:$0xff]
    %v252 = vld [vmem:[%s6 + $0x8] sm:$0xff]
    %v253 = vld [vmem:[%s6 + $0x10] sm:$0xff]
    %v254 = vld [vmem:[%s6 + $0x18] sm:$0xff]
    %256 = vset.pattern.permute.xlu0 0
    %257 = vperm.xlu0 %256, %v251
    %v258 = vpop.permute.xlu0 %257
    %261 = vset.pattern.permute.xlu0 0
    %262 = vperm.xlu0 %261, %v252
    %v263 = vpop.permute.xlu0 %262
    %266 = vset.pattern.permute.xlu0 0
    %267 = vperm.xlu0 %266, %v253
    %v268 = vpop.permute.xlu0 %267
    %271 = vset.pattern.permute.xlu0 0
    %272 = vperm.xlu0 %271, %v254
    %v273 = vpop.permute.xlu0 %272
    %v279 = vunpack.c.l.b16 %v245
    %v280 = vunpack.c.l.b16 %v246
    %v281 = vunpack.c.l.b16 %v247
    %v282 = vunpack.c.l.b16 %v248
    %v283 = vpack.c.b16 %v280, %v279
    %v284 = vpack.c.b16 %v282, %v281
    %v286 = vsel %vm185, %v283, 0
    %v289 = vsel %vm185, %v284, 0
    %291 = vmatprep.subr.bf16.mxu0 0
    %292 = vmatpush1.bf16.msra.mxu0 %v249
    %293 = vmatprep.subr.bf16.mxu0 0
    %294 = vmatpush1.bf16.msra.mxu0 %v250
    %295 = vmatprep.subr.bf16.mxu0 0
    %296 = vmatpush1.bf16.msra.mxu0 0
    %297 = vmatprep.subr.bf16.mxu0 0
    %298 = vmatpush1.bf16.msra.mxu0 0
    %299 = vmatprep.subr.bf16.mxu0 0
    %300 = vmatpush1.bf16.msra.mxu0 0
    %301 = vmatprep.subr.bf16.mxu0 0
    %302 = vmatpush1.bf16.msra.mxu0 0
    %303 = vmatprep.subr.bf16.mxu0 0
    %304 = vmatpush1.bf16.msra.mxu0 0
    %305 = vmatprep.subr.bf16.mxu0 0
    %306 = vmatpush1.bf16.msra.mxu0 0
    %307 = vmatprep.subr.bf16.mxu0 0
    %308 = vmatpush1.bf16.msra.mxu0 0
    %309 = vmatprep.subr.bf16.mxu0 0
    %310 = vmatpush1.bf16.msra.mxu0 0
    %311 = vmatprep.subr.bf16.mxu0 0
    %312 = vmatpush1.bf16.msra.mxu0 0
    %313 = vmatprep.subr.bf16.mxu0 0
    %314 = vmatpush1.bf16.msra.mxu0 0
    %315 = vmatprep.subr.bf16.mxu0 0
    %316 = vmatpush1.bf16.msra.mxu0 0
    %317 = vmatprep.subr.bf16.mxu0 0
    %318 = vmatpush1.bf16.msra.mxu0 0
    %319 = vmatprep.subr.bf16.mxu0 0
    %320 = vmatpush1.bf16.msra.mxu0 0
    %321 = vmatprep.subr.bf16.mxu0 0
    %322 = vmatpush1.bf16.msra.mxu0 0
    %323 = vmatprep.mubr.bf16.mxu0 0
    %324 = vmatmul.mubr.bf16.gmra.mrb[0].mxu0 %v286
    %v325 = vpop.f32.mrb[0].mxu0
    %v326 = vadd.f32 %v258, %v325
    %v327 = vpop.f32.mrb[0].mxu0
    %v328 = vpop.f32.mrb[0].mxu0
    %v329 = vadd.f32 %v263, %v328
    %v330 = vpop.f32.mrb[0].mxu0
    %331 = vmatprep.mubr.bf16.mxu0 0
    %332 = vmatmul.mubr.bf16.gmra.mrb[0].mxu0 %v289
    %v333 = vpop.f32.mrb[0].mxu0
    %v334 = vadd.f32 %v268, %v333
    %v335 = vpop.f32.mrb[0].mxu0
    %v336 = vpop.f32.mrb[0].mxu0
    %v337 = vadd.f32 %v273, %v336
    %v338 = vpop.f32.mrb[0].mxu0
    %339 = vdwg.mxu0
    %v340 = vmax.f32 %v326, 0.0
    %v341 = vmax.f32 %v329, 0.0
    %v342 = vmax.f32 %v334, 0.0
    %v343 = vmax.f32 %v337, 0.0
    %v344 = vld [vmem:[%s7] sm:$0xf]
    %v345 = vld [vmem:[%s7 + $0x4] sm:$0xf]
    %v346 = vld [vmem:[%s7 + $0x8] sm:$0xf]
    %v347 = vld [vmem:[%s7 + $0xc] sm:$0xf]
    %v348 = vpack.c.bf16 %v341, %v340
    %v349 = vpack.c.bf16 %v343, %v342
    %v350 = vld [vmem:[%s8] sm:$0xff]
    %v351 = vld [vmem:[%s8 + $0x8] sm:$0xff]
    %v352 = vld [vmem:[%s8 + $0x10] sm:$0xff]
    %v353 = vld [vmem:[%s8 + $0x18] sm:$0xff]
    %355 = vset.pattern.permute.xlu0 0
    %356 = vperm.xlu0 %355, %v350
    %v357 = vpop.permute.xlu0 %356
    %360 = vset.pattern.permute.xlu0 0
    %361 = vperm.xlu0 %360, %v351
    %v362 = vpop.permute.xlu0 %361
    %365 = vset.pattern.permute.xlu0 0
    %366 = vperm.xlu0 %365, %v352
    %v367 = vpop.permute.xlu0 %366
    %370 = vset.pattern.permute.xlu0 0
    %371 = vperm.xlu0 %370, %v353
    %v372 = vpop.permute.xlu0 %371
    %v378 = vunpack.c.l.b16 %v344
    %v379 = vunpack.c.l.b16 %v345
    %v380 = vunpack.c.l.b16 %v346
    %v381 = vunpack.c.l.b16 %v347
    %v382 = vpack.c.b16 %v379, %v378
    %v383 = vpack.c.b16 %v381, %v380
    %v385 = vsel %vm185, %v382, 0
    %v388 = vsel %vm185, %v383, 0
    %390 = vmatprep.subr.bf16.mxu0 0
    %391 = vmatpush1.bf16.msra.mxu0 %v348
    %392 = vmatprep.subr.bf16.mxu0 0
    %393 = vmatpush1.bf16.msra.mxu0 %v349
    %394 = vmatprep.subr.bf16.mxu0 0
    %395 = vmatpush1.bf16.msra.mxu0 0
    %396 = vmatprep.subr.bf16.mxu0 0
    %397 = vmatpush1.bf16.msra.mxu0 0
    %398 = vmatprep.subr.bf16.mxu0 0
    %399 = vmatpush1.bf16.msra.mxu0 0
    %400 = vmatprep.subr.bf16.mxu0 0
    %401 = vmatpush1.bf16.msra.mxu0 0
    %402 = vmatprep.subr.bf16.mxu0 0
    %403 = vmatpush1.bf16.msra.mxu0 0
    %404 = vmatprep.subr.bf16.mxu0 0
    %405 = vmatpush1.bf16.msra.mxu0 0
    %406 = vmatprep.subr.bf16.mxu0 0
    %407 = vmatpush1.bf16.msra.mxu0 0
    %408 = vmatprep.subr.bf16.mxu0 0
    %409 = vmatpush1.bf16.msra.mxu0 0
    %410 = vmatprep.subr.bf16.mxu0 0
    %411 = vmatpush1.bf16.msra.mxu0 0
    %412 = vmatprep.subr.bf16.mxu0 0
    %413 = vmatpush1.bf16.msra.mxu0 0
    %414 = vmatprep.subr.bf16.mxu0 0
    %415 = vmatpush1.bf16.msra.mxu0 0
    %416 = vmatprep.subr.bf16.mxu0 0
    %417 = vmatpush1.bf16.msra.mxu0 0
    %418 = vmatprep.subr.bf16.mxu0 0
    %419 = vmatpush1.bf16.msra.mxu0 0
    %420 = vmatprep.subr.bf16.mxu0 0
    %421 = vmatpush1.bf16.msra.mxu0 0
    %422 = vmatprep.mubr.bf16.mxu0 0
    %423 = vmatmul.mubr.bf16.gmra.mrb[0].mxu0 %v385
    %v424 = vpop.f32.mrb[0].mxu0
    %v425 = vadd.f32 %v357, %v424
    %v426 = vpop.f32.mrb[0].mxu0
    %v427 = vpop.f32.mrb[0].mxu0
    %v428 = vadd.f32 %v362, %v427
    %v429 = vpop.f32.mrb[0].mxu0
    %430 = vmatprep.mubr.bf16.mxu0 0
    %431 = vmatmul.mubr.bf16.gmra.mrb[0].mxu0 %v388
    %v432 = vpop.f32.mrb[0].mxu0
    %v433 = vadd.f32 %v367, %v432
    %v434 = vpop.f32.mrb[0].mxu0
    %v435 = vpop.f32.mrb[0].mxu0
    %v436 = vadd.f32 %v372, %v435
    %v437 = vpop.f32.mrb[0].mxu0
    %438 = vdwg.mxu0
    %v439 = vmax.f32 %v425, 0.0
    %v440 = vmax.f32 %v428, 0.0
    %v441 = vmax.f32 %v433, 0.0
    %v442 = vmax.f32 %v436, 0.0
    %v443 = vld [vmem:[%s9] sm:$0xff]
    %v444 = vld [vmem:[%s9 + $0x8] sm:$0xff]
    %v445 = vld [vmem:[%s9 + $0x10] sm:$0xff]
    %v446 = vld [vmem:[%s9 + $0x18] sm:$0xff]
    %448 = vset.pattern.permute.xlu0 0
    %449 = vperm.xlu0 %448, %v443
    %v450 = vpop.permute.xlu0 %449
    %453 = vset.pattern.permute.xlu0 0
    %454 = vperm.xlu0 %453, %v444
    %v455 = vpop.permute.xlu0 %454
    %458 = vset.pattern.permute.xlu0 0
    %459 = vperm.xlu0 %458, %v445
    %v460 = vpop.permute.xlu0 %459
    %463 = vset.pattern.permute.xlu0 0
    %464 = vperm.xlu0 %463, %v446
    %v465 = vpop.permute.xlu0 %464
    %v467 = vmul.f32 %v439, %v450
    %v468 = vmul.f32 %v440, %v455
    %v469 = vmul.f32 %v441, %v460
    %v470 = vmul.f32 %v442, %v465
    %vm471 = vcmask 64512
    %v472 = vsel %vm471, %v467, 0.0
    %v473 = vsel %vm471, %v468, 0.0
    %v474 = vadd.f32 %v472, %v473
    %v475 = vsel %vm471, %v469, 0.0
    %v476 = vadd.f32 %v474, %v475
    %v477 = vsel %vm471, %v470, 0.0
    %v478 = vadd.f32 %v476, %v477
    %v479 = vrot.slane %v478, 4
    %v480 = vadd.f32 %v478, %v479
    %v481 = vrot.slane %v480, 2
    %v482 = vadd.f32 %v480, %v481
    %v483 = vrot.slane %v482, 1
    %v484 = vadd.f32 %v482, %v483
    %v485 = vld [vmem:[#allocation2] sm:$0x1]
    %487 = vset.pattern.permute.xlu0 0
    %488 = vperm.xlu0 %487, %v485
    %v489 = vpop.permute.xlu0 %488
    %v491 = vlaneseq
    %v492 = vshrl.u32 %v491, 7
    %v493 = vsub.s32 0, %v492
    %v494 = vrot.slane %v489, %v493
    %v495 = vadd.f32 %v484, %v494
    %vm496 = vcmask 57344
    %497 = vst.msk [vmem:[#allocation3] sm:$0x1] %vm496, %v495
    // Predicated region
    $region46: #{tpu_custom_call.1} parent=1 // pred_check
      _
    $region47: #{tpu_custom_call.1} parent=1 // pred_check_branch
      %499 = sbr.rel (0) target = $region49
    $region48: #{tpu_custom_call.1} parent=1 // pred_region
      %s501 = ssub.s32 16, 16
      %502 = vsyncadd [#allocation4], %s501
      %s504 = sshll.u32 [#allocation3], 4
      %s505 = int_to_ptr.vmem [resolvable:$true] %s504
      %507 = dma.vmem_to_hbm [thread:$0]  %s505, 16, %s11, [#allocation4]
    $region49: #{tpu_custom_call.1} parent=1 // pred_fallthru
      _
    // Predicated region
    $region50: #{tpu_custom_call.1} parent=1 // pred_check
      _
    $region51: #{tpu_custom_call.1} parent=1 // pred_check_branch
      %509 = sbr.rel (0) target = $region53
    $region52: #{tpu_custom_call.1} parent=1 // pred_region
      %510 = dma.done [#allocation4], 16
    $region53: #{tpu_custom_call.1} parent=1 // pred_fallthru
      _
    %511 = vsyncpa [#allocation4], 1

</llo_original>
